<compile_context>
chip_gen: v6e
topology: v6e:2x2x1
jax: 0.10.0
libtpu: 0.0.40
codegen_flags: <defaults>
</compile_context>

<pallas_src>
import functools

import jax
import jax.numpy as jnp
from jax import lax
from jax.experimental import pallas as pl
from jax.experimental.pallas import tpu as pltpu

_SUBLANE = 8  # TPU sublane tile; channel blocks are padded to this for concat


# ---------------------------------------------------------------------------
# Kernel: one grid step processes Bt batch elements; lane axis = t*Bt + b.
# ---------------------------------------------------------------------------
def _make_kernel(cout, ncols, bt, p2, k2, k_taps):
    pb = p2 * bt  # lane padding width for the stride-1 conv2 window

    def kernel(e_ref, o_ref, wbig_ref, bbr_ref, w2f_ref, ball_ref,
               out_ref, spad_ref):
        e = e_ref[0]                               # (Cin_p, (l_out+P)*Bt) even phase
        o = o_ref[0]                               # (Cin_p, (l_out+P)*Bt) odd phase

        # Tap-stacked activations built in VMEM: each conv tap is a contiguous
        # lane slice of one stride-2 phase; channel blocks are sublane-aligned.
        taps = [(e if m % 2 == 0 else o)[:, (m // 2) * bt:(m // 2) * bt + ncols]
                for m in range(k_taps)]
        xk = jnp.concatenate(taps, axis=0)         # (k_taps*Cin_p, ncols)

        # --- one fused MXU matmul for all 5 stride-2 convolutions ------------
        y = jnp.dot(wbig_ref[...], xk, preferred_element_type=jnp.float32)
        # row blocks: [0:C)=conv1_4, [C:2C)=conv1_6, [2C:3C)=conv1_8,
        #             [3C:4C)=conv3+conv4 (residual)
        br = jnp.maximum(y[:3 * cout, :] + bbr_ref[...], 0.0)
        res = y[3 * cout:, :]                      # (cout, ncols)
        s = br[:cout] + br[cout:2 * cout] + br[2 * cout:3 * cout]

        # --- conv2 (stride 1, "same") via a zero-padded VMEM scratch ---------
        if pb > 0:                                 # static
            zpad = jnp.zeros((cout, pb), spad_ref.dtype)
            spad_ref[:, :pb] = zpad
            spad_ref[:, pb + ncols:] = zpad
        spad_ref[:, pb:pb + ncols] = s.astype(spad_ref.dtype)

        x2 = jnp.concatenate(
            [spad_ref[:, j * bt:j * bt + ncols] for j in range(k2)], axis=0)
        out = jnp.dot(w2f_ref[...], x2, preferred_element_type=jnp.float32)

        out_ref[0] = jnp.maximum(out + res + ball_ref[...], 0.0)

    return kernel


# ---------------------------------------------------------------------------
# One-time parameter fusion (hoisted out of the forward call).
# ---------------------------------------------------------------------------
def prepare_fused_params(params, kernel_size, kernel_size2):
    k4, k6, k8 = kernel_size - 2, kernel_size, kernel_size + 2
    p4, p6, p8 = (k4 - 2) // 2, (k6 - 2) // 2, (k8 - 2) // 2
    P = p8
    k_taps = k8
    cout, cin = params["w6"].shape[0], params["w6"].shape[1]
    cin_p = -(-cin // _SUBLANE) * _SUBLANE   # sublane-aligned channel blocks

    def embed(w, pad):
        co, _, k = w.shape
        off = P - pad
        e = jnp.zeros((co, k_taps, cin_p), jnp.float32)
        e = e.at[:, off:off + k, :cin].set(jnp.transpose(w, (0, 2, 1)))
        return e.reshape(co, k_taps * cin_p)

    w_big = jnp.concatenate(
        [embed(params["w4"], p4),
         embed(params["w6"], p6),
         embed(params["w8"], p8),
         embed(params["w3"], p6) + embed(params["wc4"], 0)], axis=0)
    b_branch = jnp.concatenate(
        [params["b4"], params["b6"], params["b8"]], axis=0)          # (3*Cout, 1)
    w2f = jnp.transpose(params["w2"], (0, 2, 1)).reshape(cout, kernel_size2 * cout)
    b_all = params["b2"] + params["b3"] + params["bc4"]              # (Cout, 1)
    return {"w_big": w_big, "b_branch": b_branch, "w2f": w2f, "b_all": b_all}


# ---------------------------------------------------------------------------
# Forward wrapper
# ---------------------------------------------------------------------------
def resnet_basic_block1_forward(x, fused, *, kernel_size, kernel_size2,
                                compute_dtype=jnp.float32):
    """x: (B, Cin, L) float32 -> (B, Cout, (L-2)//2 + 1) float32."""
    assert kernel_size % 2 == 0 and kernel_size >= 4
    assert kernel_size2 % 2 == 1

    B, Cin, L = x.shape
    k8 = kernel_size + 2
    k_taps = k8
    P = (k8 - 2) // 2
    p2 = (kernel_size2 - 1) // 2
    l_out = (L - 2) // 2 + 1
    Cout = fused["b_all"].shape[0]
    Cin_p = fused["w_big"].shape[1] // k_taps
    assert Cin_p >= Cin

    # --- batch tiling: fold Bt batches into the lane axis (col = t*Bt + b) ---
    Bt = max(1, min(B, -(-512 // l_out)))
    T = -(-B // Bt)
    B_pad = T * Bt
    ncols = l_out * Bt
    half = l_out + P                      # per-phase length incl. tap overhang

    # --- stride-2 phase split (even / odd positions of the P-padded signal) --
    # Every conv tap becomes a contiguous lane slice of one phase, so no
    # k_taps-fold im2col ever touches HBM (input traffic ~= |x|).
    xp = jnp.pad(x.astype(compute_dtype),
                 ((0, B_pad - B), (0, Cin_p - Cin), (P, P)))
    even = xp[:, :, 0:2 * half - 1:2]     # (B_pad, Cin_p, half)
    odd = xp[:, :, 1:2 * half:2]          # (B_pad, Cin_p, half)

    def fold(a):                          # (B_pad, C, half) -> (T, C, half*Bt)
        return (a.reshape(T, Bt, Cin_p, half)
                 .transpose(0, 2, 3, 1)
                 .reshape(T, Cin_p, half * Bt))

    ef, of = fold(even), fold(odd)

    w_big = fused["w_big"].astype(compute_dtype)
    w2f = fused["w2f"].astype(compute_dtype)
    b_branch = fused["b_branch"]
    b_all = fused["b_all"]

    def full_spec(a):
        return pl.BlockSpec(a.shape, lambda g: (0,) * a.ndim)

    itemsize = jnp.dtype(compute_dtype).itemsize
    kc = k_taps * Cin_p
    flops = 2 * T * ncols * (4 * Cout * kc + Cout * kernel_size2 * Cout)
    bytes_accessed = (2 * T * Cin_p * half * Bt * itemsize
                      + (w_big.size + w2f.size) * itemsize
                      + T * Cout * ncols * 4
                      + (b_branch.size + b_all.size) * 4)

    kernel = _make_kernel(Cout, ncols, Bt, p2, kernel_size2, k_taps)

    out_tiled = pl.pallas_call(
        kernel,
        out_shape=jax.ShapeDtypeStruct((T, Cout, ncols), jnp.float32),
        grid=(T,),
        in_specs=[pl.BlockSpec((1, Cin_p, half * Bt), lambda g: (g, 0, 0)),
                  pl.BlockSpec((1, Cin_p, half * Bt), lambda g: (g, 0, 0)),
                  full_spec(w_big), full_spec(b_branch),
                  full_spec(w2f), full_spec(b_all)],
        out_specs=pl.BlockSpec((1, Cout, ncols), lambda g: (g, 0, 0)),
        scratch_shapes=[pltpu.VMEM((Cout, ncols + 2 * p2 * Bt), compute_dtype)],
        compiler_params=pltpu.CompilerParams(dimension_semantics=("parallel",)),
        cost_estimate=pl.CostEstimate(flops=flops, transcendentals=0,
                                      bytes_accessed=bytes_accessed),
    )(ef, of, w_big, b_branch, w2f, b_all)

    out = out_tiled.reshape(T, Cout, l_out, Bt).transpose(0, 3, 1, 2)
    return out.reshape(B_pad, Cout, l_out)[:B]


# ---------------------------------------------------------------------------
# Deterministic parameter init (PyTorch Conv1d default: U(-1/sqrt(fan_in), .))
# ---------------------------------------------------------------------------
def _conv_init(key, cout, cin, k):
    kw, kb = jax.random.split(key)
    bound = float((cin * k) ** -0.5)
    w = jax.random.uniform(kw, (cout, cin, k), jnp.float32, -bound, bound)
    b = jax.random.uniform(kb, (cout, 1), jnp.float32, -bound, bound)
    return w, b


def make_params(key, cin, cout, kernel_size, kernel_size2):
    ks = jax.random.split(key, 6)
    k4, k6, k8 = kernel_size - 2, kernel_size, kernel_size + 2
    p = {}
    p["w4"], p["b4"] = _conv_init(ks[0], cout, cin, k4)
    p["w6"], p["b6"] = _conv_init(ks[1], cout, cin, k6)
    p["w8"], p["b8"] = _conv_init(ks[2], cout, cin, k8)
    p["w2"], p["b2"] = _conv_init(ks[3], cout, cout, kernel_size2)
    p["w3"], p["b3"] = _conv_init(ks[4], cout, cin, kernel_size)
    p["wc4"], p["bc4"] = _conv_init(ks[5], cout, cin, 2)
    return p


# ---------------------------------------------------------------------------
# Pure-JAX reference (mirrors the PyTorch forward) for verification
# ---------------------------------------------------------------------------
def _conv1d_ref(x, w, b, stride, pad):
    y = lax.conv_general_dilated(x, w, (stride,), [(pad, pad)],
                                 dimension_numbers=("NCH", "OIH", "NCH"))
    return y + b.reshape(1, -1, 1)


def reference_forward(x, p, kernel_size, kernel_size2):
    k4, k6, k8 = kernel_size - 2, kernel_size, kernel_size + 2
    p4, p6, p8 = (k4 - 2) // 2, (k6 - 2) // 2, (k8 - 2) // 2
    p2 = (kernel_size2 - 1) // 2
    o4 = jax.nn.relu(_conv1d_ref(x, p["w4"], p["b4"], 2, p4))
    o6 = jax.nn.relu(_conv1d_ref(x, p["w6"], p["b6"], 2, p6))
    o8 = jax.nn.relu(_conv1d_ref(x, p["w8"], p["b8"], 2, p8))
    out = o4 + o6 + o8
    out = _conv1d_ref(out, p["w2"], p["b2"], 1, p2)
    out = out + _conv1d_ref(x, p["w3"], p["b3"], 2, p6)
    out = out + _conv1d_ref(x, p["wc4"], p["bc4"], 2, 0)
    return jax.nn.relu(out)


if __name__ == "__main__":
    B, Cin, Cout, L = 2, 4, 8, 16
    kernel_size, kernel_size2 = 4, 3   # even k required by the module's padding math

    key = jax.random.PRNGKey(0)
    kx, kp = jax.random.split(key)
    x = jax.random.normal(kx, (B, Cin, L), jnp.float32)
    params = make_params(kp, Cin, Cout, kernel_size, kernel_size2)
    fused = prepare_fused_params(params, kernel_size, kernel_size2)

    fwd = jax.jit(functools.partial(resnet_basic_block1_forward,
                                    kernel_size=kernel_size,
                                    kernel_size2=kernel_size2))
    out = jax.block_until_ready(fwd(x, fused))

    ref = jax.block_until_ready(reference_forward(x, params, kernel_size, kernel_size2))
    err = float(jnp.max(jnp.abs(out - ref)))
    assert out.shape == (B, Cout, L // 2), out.shape
    assert err < 1e-4, f"max abs error {err}"
    print("KERNEL_OK")
</pallas_src>

<mosaic_0001>
module attributes {stable_mosaic.version = 11 : i64} {
  func.func @kernel(%arg0: i32, %arg1: memref<1x8x20xf32, #tpu.memory_space<vmem>>, %arg2: memref<1x8x20xf32, #tpu.memory_space<vmem>>, %arg3: memref<32x48xf32, #tpu.memory_space<vmem>>, %arg4: memref<24x1xf32, #tpu.memory_space<vmem>>, %arg5: memref<8x24xf32, #tpu.memory_space<vmem>>, %arg6: memref<8x1xf32, #tpu.memory_space<vmem>>, %arg7: memref<1x8x16xf32, #tpu.memory_space<vmem>>, %arg8: memref<8x20xf32, #tpu.memory_space<vmem>>) attributes {dimension_semantics = [#tpu.dimension_semantics<parallel>], iteration_bounds = array<i64: 1>, scalar_prefetch = 0 : i64, scratch_operands = 1 : i64, tpu.core_type = #tpu.core_type<tc>, window_params = [{transform_indices = @transform_0, window_bounds = array<i64: 1, 8, 20>}, {transform_indices = @transform_1, window_bounds = array<i64: 1, 8, 20>}, {pipeline_mode = #tpu.pipeline_mode<synchronous>, transform_indices = @transform_2, window_bounds = array<i64: 32, 48>}, {pipeline_mode = #tpu.pipeline_mode<synchronous>, transform_indices = @transform_3, window_bounds = array<i64: 24, 1>}, {pipeline_mode = #tpu.pipeline_mode<synchronous>, transform_indices = @transform_4, window_bounds = array<i64: 8, 24>}, {pipeline_mode = #tpu.pipeline_mode<synchronous>, transform_indices = @transform_5, window_bounds = array<i64: 8, 1>}, {transform_indices = @transform_6, window_bounds = array<i64: 1, 8, 16>}]} {
    %c0 = arith.constant 0 : index
    %c0_0 = arith.constant 0 : index
    %c0_1 = arith.constant 0 : index
    %0 = vector.load %arg1[%c0, %c0_0, %c0_1] : memref<1x8x20xf32, #tpu.memory_space<vmem>>, vector<1x8x20xf32>
    %1 = vector.shape_cast %0 : vector<1x8x20xf32> to vector<8x20xf32>
    %c0_2 = arith.constant 0 : index
    %c0_3 = arith.constant 0 : index
    %c0_4 = arith.constant 0 : index
    %2 = vector.load %arg2[%c0_2, %c0_3, %c0_4] : memref<1x8x20xf32, #tpu.memory_space<vmem>>, vector<1x8x20xf32>
    %3 = vector.shape_cast %2 : vector<1x8x20xf32> to vector<8x20xf32>
    %4 = vector.extract_strided_slice %1 {offsets = [0, 0], sizes = [8, 16], strides = [1, 1]} : vector<8x20xf32> to vector<8x16xf32>
    %5 = vector.extract_strided_slice %3 {offsets = [0, 0], sizes = [8, 16], strides = [1, 1]} : vector<8x20xf32> to vector<8x16xf32>
    %6 = vector.extract_strided_slice %1 {offsets = [0, 2], sizes = [8, 16], strides = [1, 1]} : vector<8x20xf32> to vector<8x16xf32>
    %7 = vector.extract_strided_slice %3 {offsets = [0, 2], sizes = [8, 16], strides = [1, 1]} : vector<8x20xf32> to vector<8x16xf32>
    %8 = vector.extract_strided_slice %1 {offsets = [0, 4], sizes = [8, 16], strides = [1, 1]} : vector<8x20xf32> to vector<8x16xf32>
    %9 = vector.extract_strided_slice %3 {offsets = [0, 4], sizes = [8, 16], strides = [1, 1]} : vector<8x20xf32> to vector<8x16xf32>
    %10 = tpu.concatenate %4, %5, %6, %7, %8, %9 in 0 : vector<8x16xf32>, vector<8x16xf32>, vector<8x16xf32>, vector<8x16xf32>, vector<8x16xf32>, vector<8x16xf32> -> vector<48x16xf32>
    %c0_5 = arith.constant 0 : index
    %c0_6 = arith.constant 0 : index
    %11 = vector.load %arg3[%c0_5, %c0_6] : memref<32x48xf32, #tpu.memory_space<vmem>>, vector<32x48xf32>
    %cst = arith.constant dense<0.000000e+00> : vector<32x16xf32>
    %12 = tpu.matmul %11, %10, %cst {dimension_numbers = #tpu.dot_dimension_numbers<[1], [0], [0], [1], [0, 0, 1, 1], [], []>} : vector<32x48xf32>, vector<48x16xf32>, vector<32x16xf32> -> vector<32x16xf32>
    %13 = vector.extract_strided_slice %12 {offsets = [0, 0], sizes = [24, 16], strides = [1, 1]} : vector<32x16xf32> to vector<24x16xf32>
    %c0_7 = arith.constant 0 : index
    %c0_8 = arith.constant 0 : index
    %14 = vector.load %arg4[%c0_7, %c0_8] : memref<24x1xf32, #tpu.memory_space<vmem>>, vector<24x1xf32>
    %15 = vector.broadcast %14 : vector<24x1xf32> to vector<24x16xf32>
    %16 = arith.addf %13, %15 : vector<24x16xf32>
    %cst_9 = arith.constant 0.000000e+00 : f32
    %17 = vector.broadcast %cst_9 : f32 to vector<24x16xf32>
    %18 = arith.maximumf %16, %17 : vector<24x16xf32>
    %19 = vector.extract_strided_slice %12 {offsets = [24, 0], sizes = [8, 16], strides = [1, 1]} : vector<32x16xf32> to vector<8x16xf32>
    %20 = vector.extract_strided_slice %18 {offsets = [0, 0], sizes = [8, 16], strides = [1, 1]} : vector<24x16xf32> to vector<8x16xf32>
    %21 = vector.extract_strided_slice %18 {offsets = [8, 0], sizes = [8, 16], strides = [1, 1]} : vector<24x16xf32> to vector<8x16xf32>
    %22 = arith.addf %20, %21 : vector<8x16xf32>
    %23 = vector.extract_strided_slice %18 {offsets = [16, 0], sizes = [8, 16], strides = [1, 1]} : vector<24x16xf32> to vector<8x16xf32>
    %24 = arith.addf %22, %23 : vector<8x16xf32>
    %cst_10 = arith.constant 0.000000e+00 : f32
    %25 = vector.broadcast %cst_10 : f32 to vector<8x2xf32>
    %c0_11 = arith.constant 0 : index
    %c0_12 = arith.constant 0 : index
    %26 = vector.load %arg8[%c0_11, %c0_12] : memref<8x20xf32, #tpu.memory_space<vmem>>, vector<8x2xf32>
    tpu.vector_store %arg8[%c0_11, %c0_12], %25 {strides = array<i32>} : memref<8x20xf32, #tpu.memory_space<vmem>>, vector<8x2xf32>,
    %c0_13 = arith.constant 0 : index
    %c18 = arith.constant 18 : index
    %27 = vector.load %arg8[%c0_13, %c18] : memref<8x20xf32, #tpu.memory_space<vmem>>, vector<8x2xf32>
    tpu.vector_store %arg8[%c0_13, %c18], %25 {strides = array<i32>} : memref<8x20xf32, #tpu.memory_space<vmem>>, vector<8x2xf32>,
    %c0_14 = arith.constant 0 : index
    %c2 = arith.constant 2 : index
    %28 = vector.load %arg8[%c0_14, %c2] : memref<8x20xf32, #tpu.memory_space<vmem>>, vector<8x16xf32>
    tpu.vector_store %arg8[%c0_14, %c2], %24 {strides = array<i32>} : memref<8x20xf32, #tpu.memory_space<vmem>>, vector<8x16xf32>,
    %c0_15 = arith.constant 0 : index
    %c0_16 = arith.constant 0 : index
    %29 = vector.load %arg8[%c0_15, %c0_16] : memref<8x20xf32, #tpu.memory_space<vmem>>, vector<8x16xf32>
    %c0_17 = arith.constant 0 : index
    %c2_18 = arith.constant 2 : index
    %30 = vector.load %arg8[%c0_17, %c2_18] : memref<8x20xf32, #tpu.memory_space<vmem>>, vector<8x16xf32>
    %c0_19 = arith.constant 0 : index
    %c4 = arith.constant 4 : index
    %31 = vector.load %arg8[%c0_19, %c4] : memref<8x20xf32, #tpu.memory_space<vmem>>, vector<8x16xf32>
    %32 = tpu.concatenate %29, %30, %31 in 0 : vector<8x16xf32>, vector<8x16xf32>, vector<8x16xf32> -> vector<24x16xf32>
    %c0_20 = arith.constant 0 : index
    %c0_21 = arith.constant 0 : index
    %33 = vector.load %arg5[%c0_20, %c0_21] : memref<8x24xf32, #tpu.memory_space<vmem>>, vector<8x24xf32>
    %cst_22 = arith.constant dense<0.000000e+00> : vector<8x16xf32>
    %34 = tpu.matmul %33, %32, %cst_22 {dimension_numbers = #tpu.dot_dimension_numbers<[1], [0], [0], [1], [0, 0, 1, 1], [], []>} : vector<8x24xf32>, vector<24x16xf32>, vector<8x16xf32> -> vector<8x16xf32>
    %35 = arith.addf %34, %19 : vector<8x16xf32>
    %c0_23 = arith.constant 0 : index
    %c0_24 = arith.constant 0 : index
    %36 = vector.load %arg6[%c0_23, %c0_24] : memref<8x1xf32, #tpu.memory_space<vmem>>, vector<8x1xf32>
    %37 = vector.broadcast %36 : vector<8x1xf32> to vector<8x16xf32>
    %38 = arith.addf %35, %37 : vector<8x16xf32>
    %cst_25 = arith.constant 0.000000e+00 : f32
    %39 = vector.broadcast %cst_25 : f32 to vector<8x16xf32>
    %40 = arith.maximumf %38, %39 : vector<8x16xf32>
    %c0_26 = arith.constant 0 : index
    %c0_27 = arith.constant 0 : index
    %c0_28 = arith.constant 0 : index
    %41 = vector.load %arg7[%c0_26, %c0_27, %c0_28] : memref<1x8x16xf32, #tpu.memory_space<vmem>>, vector<1x8x16xf32>
    %42 = vector.shape_cast %41 : vector<1x8x16xf32> to vector<8x16xf32>
    %43 = vector.shape_cast %40 : vector<8x16xf32> to vector<1x8x16xf32>
    tpu.vector_store %arg7[%c0_26, %c0_27, %c0_28], %43 {strides = array<i32>} : memref<1x8x16xf32, #tpu.memory_space<vmem>>, vector<1x8x16xf32>,
    return
  }
  func.func @transform_0(%arg0: i32) -> (i32, i32, i32) {
    %c0_i32 = arith.constant 0 : i32
    %c0_i32_0 = arith.constant 0 : i32
    %c0_i32_1 = arith.constant 0 : i32
    return %arg0, %c0_i32, %c0_i32_0 : i32, i32, i32
  }
  func.func @transform_1(%arg0: i32) -> (i32, i32, i32) {
    %c0_i32 = arith.constant 0 : i32
    %c0_i32_0 = arith.constant 0 : i32
    %c0_i32_1 = arith.constant 0 : i32
    return %arg0, %c0_i32, %c0_i32_0 : i32, i32, i32
  }
  func.func @transform_2(%arg0: i32) -> (i32, i32) {
    %c0_i32 = arith.constant 0 : i32
    %c0_i32_0 = arith.constant 0 : i32
    %c0_i32_1 = arith.constant 0 : i32
    return %c0_i32, %c0_i32_0 : i32, i32
  }
  func.func @transform_3(%arg0: i32) -> (i32, i32) {
    %c0_i32 = arith.constant 0 : i32
    %c0_i32_0 = arith.constant 0 : i32
    %c0_i32_1 = arith.constant 0 : i32
    return %c0_i32, %c0_i32_0 : i32, i32
  }
  func.func @transform_4(%arg0: i32) -> (i32, i32) {
    %c0_i32 = arith.constant 0 : i32
    %c0_i32_0 = arith.constant 0 : i32
    %c0_i32_1 = arith.constant 0 : i32
    return %c0_i32, %c0_i32_0 : i32, i32
  }
  func.func @transform_5(%arg0: i32) -> (i32, i32) {
    %c0_i32 = arith.constant 0 : i32
    %c0_i32_0 = arith.constant 0 : i32
    %c0_i32_1 = arith.constant 0 : i32
    return %c0_i32, %c0_i32_0 : i32, i32
  }
  func.func @transform_6(%arg0: i32) -> (i32, i32, i32) {
    %c0_i32 = arith.constant 0 : i32
    %c0_i32_0 = arith.constant 0 : i32
    %c0_i32_1 = arith.constant 0 : i32
    return %arg0, %c0_i32, %c0_i32_0 : i32, i32, i32
  }
}

</mosaic_0001>

<llo_original>
// kernel: resnet_basic_block1_forward.1
$region0: #{resnet_basic_block1_forward.1}
  #allocation0 [shape = 'u32[]', space=smem, size = 0x4, offset = 0x4, fixed_abs, tag = 'smem constant byte address 0x4 - core index']
  #allocation1 [shape = 'u32[144,128]{1,0:T(1,128)}', space=vmem, size = 0x12000, scoped, tag = 'internal scratch']
  #allocation2 [shape = 'f32[8,20]{1,0:T(8,128)}', space=vmem, size = 0x1000, scoped, tag = 'scratch operand']
  %s0 = inlined_call_operand.vmem [shape: f32[1,8,20], index: 0, kind: input, shape index: {}]
  %s1 = inlined_call_operand.vmem [shape: f32[1,8,20], index: 1, kind: input, shape index: {}]
  %s2 = inlined_call_operand.vmem [shape: f32[32,48], index: 2, kind: input, shape index: {}]
  %s3 = inlined_call_operand.vmem [shape: f32[24,1], index: 3, kind: input, shape index: {}]
  %s4 = inlined_call_operand.vmem [shape: f32[8,24], index: 4, kind: input, shape index: {}]
  %s5 = inlined_call_operand.vmem [shape: f32[8,1], index: 5, kind: input, shape index: {}]
  %s6 = inlined_call_operand.vmem [shape: f32[1,8,16], index: 6, kind: output, shape index: {}]
  %s7 = sld [smem:[#allocation0]]
  $region34: #{resnet_basic_block1_forward.1} parent=0
    _
  %s9 = ssub.s32 1, %s7
  %s10 = scalar_select 0, %s9, %s7
  // Predicated region
  $region2: #{resnet_basic_block1_forward.1} parent=0 // pred_check
    _
  $region3: #{resnet_basic_block1_forward.1} parent=0 // pred_check_branch
    %12 = sbr.rel (0) target = $region5
  $region4: #{resnet_basic_block1_forward.1} parent=0 // pred_region
    _
  $region5: #{resnet_basic_block1_forward.1} parent=0 // pred_fallthru
    _
  // Predicated region
  $region6: #{resnet_basic_block1_forward.1} parent=0 // pred_check
    _
  $region7: #{resnet_basic_block1_forward.1} parent=0 // pred_check_branch
    %14 = sbr.rel (0) target = $region9
  $region8: #{resnet_basic_block1_forward.1} parent=0 // pred_region
    _
  $region9: #{resnet_basic_block1_forward.1} parent=0 // pred_fallthru
    _
  // Predicated region
  $region10: #{resnet_basic_block1_forward.1} parent=0 // pred_check
    _
  $region11: #{resnet_basic_block1_forward.1} parent=0 // pred_check_branch
    %16 = sbr.rel (0) target = $region13
  $region12: #{resnet_basic_block1_forward.1} parent=0 // pred_region
    _
  $region13: #{resnet_basic_block1_forward.1} parent=0 // pred_fallthru
    _
  // Predicated region
  $region14: #{resnet_basic_block1_forward.1} parent=0 // pred_check
    _
  $region15: #{resnet_basic_block1_forward.1} parent=0 // pred_check_branch
    %18 = sbr.rel (0) target = $region17
  $region16: #{resnet_basic_block1_forward.1} parent=0 // pred_region
    _
  $region17: #{resnet_basic_block1_forward.1} parent=0 // pred_fallthru
    _
  // Predicated region
  $region18: #{resnet_basic_block1_forward.1} parent=0 // pred_check
    _
  $region19: #{resnet_basic_block1_forward.1} parent=0 // pred_check_branch
    %20 = sbr.rel (0) target = $region21
  $region20: #{resnet_basic_block1_forward.1} parent=0 // pred_region
    _
  $region21: #{resnet_basic_block1_forward.1} parent=0 // pred_fallthru
    _
  // Predicated region
  $region22: #{resnet_basic_block1_forward.1} parent=0 // pred_check
    _
  $region23: #{resnet_basic_block1_forward.1} parent=0 // pred_check_branch
    %22 = sbr.rel (0) target = $region25
  $region24: #{resnet_basic_block1_forward.1} parent=0 // pred_region
    _
  $region25: #{resnet_basic_block1_forward.1} parent=0 // pred_fallthru
    _
  %v23 = vld [vmem:[%s0] sm:$0xff]
  %v24 = vld [vmem:[%s1] sm:$0xff]
  %26 = vrot.lane.b32.xlu0 %v23, 126
  %v27 = vpop.permute.xlu0 %26
  %30 = vrot.lane.b32.xlu0 %v24, 126
  %v31 = vpop.permute.xlu0 %30
  %33 = vrot.lane.b32.xlu0 %v23, 124
  %v34 = vpop.permute.xlu0 %33
  %36 = vrot.lane.b32.xlu0 %v24, 124
  %v37 = vpop.permute.xlu0 %36
  %v39 = vld [vmem:[%s2] sm:$0xff]
  %v40 = vld [vmem:[%s2 + $0x8] sm:$0xff]
  %v41 = vld [vmem:[%s2 + $0x10] sm:$0xff]
  %v42 = vld [vmem:[%s2 + $0x18] sm:$0xff]
  %vm43 = vcmask 392192
  %v45 = vsel %vm43, %v39, 0
  %v48 = vsel %vm43, %v40, 0
  %v51 = vsel %vm43, %v41, 0
  %v54 = vsel %vm43, %v42, 0
  %56 = vmatprep.subr.mxu0 0.0
  %57 = vmatpush1.msra.mxu0 0.0
  %58 = vmatprep.subr.mxu0 0.0
  %59 = vmatpush1.msra.mxu0 0.0
  %60 = vmatprep.subr.mxu0 0.0
  %61 = vmatpush1.msra.mxu0 0.0
  %62 = vmatprep.subr.mxu0 0.0
  %63 = vmatpush1.msra.mxu0 0.0
  %64 = vmatprep.subr.mxu0 0.0
  %65 = vmatpush1.msra.mxu0 0.0
  %66 = vmatprep.subr.mxu0 0.0
  %67 = vmatpush1.msra.mxu0 0.0
  %68 = vmatprep.subr.mxu0 0.0
  %69 = vmatpush1.msra.mxu0 0.0
  %70 = vmatprep.subr.mxu0 0.0
  %71 = vmatpush1.msra.mxu0 0.0
  %72 = vmatprep.subr.mxu0 0.0
  %73 = vmatpush1.msra.mxu0 0.0
  %74 = vmatprep.subr.mxu0 0.0
  %75 = vmatpush1.msra.mxu0 0.0
  %76 = vmatprep.subr.mxu0 0.0
  %77 = vmatpush1.msra.mxu0 %v37
  %78 = vmatprep.subr.mxu0 0.0
  %79 = vmatpush1.msra.mxu0 %v34
  %80 = vmatprep.subr.mxu0 0.0
  %81 = vmatpush1.msra.mxu0 %v31
  %82 = vmatprep.subr.mxu0 0.0
  %83 = vmatpush1.msra.mxu0 %v27
  %84 = vmatprep.subr.mxu0 0.0
  %85 = vmatpush1.msra.mxu0 %v24
  %86 = vmatprep.subr.mxu0 0.0
  %87 = vmatpush1.msra.mxu0 %v23
  %88 = vmatprep.subr.mxu0 0.0
  %89 = vmatpush2.msra.mxu0 0.0
  %90 = vmatprep.subr.mxu0 0.0
  %91 = vmatpush2.msra.mxu0 0.0
  %92 = vmatprep.subr.mxu0 0.0
  %93 = vmatpush2.msra.mxu0 0.0
  %94 = vmatprep.subr.mxu0 0.0
  %95 = vmatpush2.msra.mxu0 0.0
  %96 = vmatprep.subr.mxu0 0.0
  %97 = vmatpush2.msra.mxu0 0.0
  %98 = vmatprep.subr.mxu0 0.0
  %99 = vmatpush2.msra.mxu0 0.0
  %100 = vmatprep.subr.mxu0 0.0
  %101 = vmatpush2.msra.mxu0 0.0
  %102 = vmatprep.subr.mxu0 0.0
  %103 = vmatpush2.msra.mxu0 0.0
  %104 = vmatprep.subr.mxu0 0.0
  %105 = vmatpush2.msra.mxu0 0.0
  %106 = vmatprep.subr.mxu0 0.0
  %107 = vmatpush2.msra.mxu0 0.0
  %108 = vmatprep.subr.mxu0 0.0
  %109 = vmatpush2.msra.mxu0 0.0
  %110 = vmatprep.subr.mxu0 0.0
  %111 = vmatpush2.msra.mxu0 0.0
  %112 = vmatprep.subr.mxu0 0.0
  %113 = vmatpush2.msra.mxu0 0.0
  %114 = vmatprep.subr.mxu0 0.0
  %115 = vmatpush2.msra.mxu0 0.0
  %116 = vmatprep.subr.mxu0 0.0
  %117 = vmatpush2.msra.mxu0 0.0
  %118 = vmatprep.subr.mxu0 0.0
  %119 = vmatpush2.msra.mxu0 0.0
  %120 = vmatprep.mubr.f32.mxu0 0.0
  %121 = vmatmul.mubr.f32.gmra.mxu0 %v45
  %v122 = vpop.f32.mrf.mxu0
  %v123 = vadd.f32 0.0, %v122
  %v124 = vpop.f32.mrf.mxu0
  %125 = vmatprep.mubr.f32.mxu0 0.0
  %126 = vmatmul.mubr.f32.gmra.mxu0 %v48
  %v127 = vpop.f32.mrf.mxu0
  %v128 = vadd.f32 0.0, %v127
  %v129 = vpop.f32.mrf.mxu0
  %130 = vmatprep.mubr.f32.mxu0 0.0
  %131 = vmatmul.mubr.f32.gmra.mxu0 %v51
  %v132 = vpop.f32.mrf.mxu0
  %v133 = vadd.f32 0.0, %v132
  %v134 = vpop.f32.mrf.mxu0
  %135 = vmatprep.mubr.f32.mxu0 0.0
  %136 = vmatmul.mubr.f32.gmra.mxu0 %v54
  %v137 = vpop.f32.mrf.mxu0
  %v138 = vadd.f32 0.0, %v137
  %v139 = vpop.f32.mrf.mxu0
  %140 = vdwg.mxu0
  %v141 = vld [vmem:[%s3] sm:$0xff]
  %v142 = vld [vmem:[%s3 + $0x8] sm:$0xff]
  %v143 = vld [vmem:[%s3 + $0x10] sm:$0xff]
  %145 = vset.pattern.permute.xlu0 0
  %146 = vperm.xlu0 %145, %v141
  %v147 = vpop.permute.xlu0 %146
  %150 = vset.pattern.permute.xlu0 0
  %151 = vperm.xlu0 %150, %v142
  %v152 = vpop.permute.xlu0 %151
  %155 = vset.pattern.permute.xlu0 0
  %156 = vperm.xlu0 %155, %v143
  %v157 = vpop.permute.xlu0 %156
  %v159 = vadd.f32 %v123, %v147
  %v160 = vadd.f32 %v128, %v152
  %v161 = vadd.f32 %v133, %v157
  %v162 = vmax.f32 %v159, 0.0
  %v163 = vmax.f32 %v160, 0.0
  %v164 = vmax.f32 %v161, 0.0
  %v165 = vadd.f32 %v162, %v163
  %v166 = vadd.f32 %v165, %v164
  %vm167 = vcmask 15360
  %168 = vst.msk [vmem:[#allocation2] sm:$0xff] %vm167, 0.0
  %vm169 = vcmask 162960
  %170 = vst.msk [vmem:[#allocation2] sm:$0xff] %vm169, 0.0
  %172 = vrot.lane.b32.xlu0 %v166, 2
  %v173 = vpop.permute.xlu0 %172
  %vm175 = vcmask 146448
  %176 = vst.msk [vmem:[#allocation2] sm:$0xff] %vm175, %v173
  %v177 = vld [vmem:[#allocation2] sm:$0xff]
  %179 = vrot.lane.b32.xlu0 %v177, 126
  %v180 = vpop.permute.xlu0 %179
  %182 = vrot.lane.b32.xlu0 %v177, 124
  %v183 = vpop.permute.xlu0 %182
  %v185 = vld [vmem:[%s4] sm:$0xff]
  %vm186 = vcmask 195584
  %v188 = vsel %vm186, %v185, 0
  %190 = vmatprep.subr.mxu0 0.0
  %191 = vmatpush1.msra.mxu0 0.0
  %192 = vmatprep.subr.mxu0 0.0
  %193 = vmatpush1.msra.mxu0 0.0
  %194 = vmatprep.subr.mxu0 0.0
  %195 = vmatpush1.msra.mxu0 0.0
  %196 = vmatprep.subr.mxu0 0.0
  %197 = vmatpush1.msra.mxu0 0.0
  %198 = vmatprep.subr.mxu0 0.0
  %199 = vmatpush1.msra.mxu0 0.0
  %200 = vmatprep.subr.mxu0 0.0
  %201 = vmatpush1.msra.mxu0 0.0
  %202 = vmatprep.subr.mxu0 0.0
  %203 = vmatpush1.msra.mxu0 0.0
  %204 = vmatprep.subr.mxu0 0.0
  %205 = vmatpush1.msra.mxu0 0.0
  %206 = vmatprep.subr.mxu0 0.0
  %207 = vmatpush1.msra.mxu0 0.0
  %208 = vmatprep.subr.mxu0 0.0
  %209 = vmatpush1.msra.mxu0 0.0
  %210 = vmatprep.subr.mxu0 0.0
  %211 = vmatpush1.msra.mxu0 0.0
  %212 = vmatprep.subr.mxu0 0.0
  %213 = vmatpush1.msra.mxu0 0.0
  %214 = vmatprep.subr.mxu0 0.0
  %215 = vmatpush1.msra.mxu0 0.0
  %216 = vmatprep.subr.mxu0 0.0
  %217 = vmatpush1.msra.mxu0 %v183
  %218 = vmatprep.subr.mxu0 0.0
  %219 = vmatpush1.msra.mxu0 %v180
  %220 = vmatprep.subr.mxu0 0.0
  %221 = vmatpush1.msra.mxu0 %v177
  %222 = vmatprep.subr.mxu0 0.0
  %223 = vmatpush2.msra.mxu0 0.0
  %224 = vmatprep.subr.mxu0 0.0
  %225 = vmatpush2.msra.mxu0 0.0
  %226 = vmatprep.subr.mxu0 0.0
  %227 = vmatpush2.msra.mxu0 0.0
  %228 = vmatprep.subr.mxu0 0.0
  %229 = vmatpush2.msra.mxu0 0.0
  %230 = vmatprep.subr.mxu0 0.0
  %231 = vmatpush2.msra.mxu0 0.0
  %232 = vmatprep.subr.mxu0 0.0
  %233 = vmatpush2.msra.mxu0 0.0
  %234 = vmatprep.subr.mxu0 0.0
  %235 = vmatpush2.msra.mxu0 0.0
  %236 = vmatprep.subr.mxu0 0.0
  %237 = vmatpush2.msra.mxu0 0.0
  %238 = vmatprep.subr.mxu0 0.0
  %239 = vmatpush2.msra.mxu0 0.0
  %240 = vmatprep.subr.mxu0 0.0
  %241 = vmatpush2.msra.mxu0 0.0
  %242 = vmatprep.subr.mxu0 0.0
  %243 = vmatpush2.msra.mxu0 0.0
  %244 = vmatprep.subr.mxu0 0.0
  %245 = vmatpush2.msra.mxu0 0.0
  %246 = vmatprep.subr.mxu0 0.0
  %247 = vmatpush2.msra.mxu0 0.0
  %248 = vmatprep.subr.mxu0 0.0
  %249 = vmatpush2.msra.mxu0 0.0
  %250 = vmatprep.subr.mxu0 0.0
  %251 = vmatpush2.msra.mxu0 0.0
  %252 = vmatprep.subr.mxu0 0.0
  %253 = vmatpush2.msra.mxu0 0.0
  %254 = vmatprep.mubr.f32.mxu0 0.0
  %255 = vmatmul.mubr.f32.gmra.mxu0 %v188
  %v256 = vpop.f32.mrf.mxu0
  %v257 = vadd.f32 %v138, %v256
  %v258 = vpop.f32.mrf.mxu0
  %259 = vdwg.mxu0
  %v260 = vld [vmem:[%s5] sm:$0xff]
  %262 = vset.pattern.permute.xlu0 0
  %263 = vperm.xlu0 %262, %v260
  %v264 = vpop.permute.xlu0 %263
  %v266 = vadd.f32 %v257, %v264
  %v267 = vmax.f32 %v266, 0.0
  %vm268 = vcmask 130048
  %269 = vst.msk [vmem:[%s6] sm:$0xff] %vm268, %v267
  // Predicated region
  $region26: #{resnet_basic_block1_forward.1} parent=0 // pred_check
    _
  $region27: #{resnet_basic_block1_forward.1} parent=0 // pred_check_branch
    %271 = sbr.rel (0) target = $region29
  $region28: #{resnet_basic_block1_forward.1} parent=0 // pred_region
    _
  $region29: #{resnet_basic_block1_forward.1} parent=0 // pred_fallthru
    _
  // Predicated region
  $region30: #{resnet_basic_block1_forward.1} parent=0 // pred_check
    _
  $region31: #{resnet_basic_block1_forward.1} parent=0 // pred_check_branch
    %273 = sbr.rel (0) target = $region33
  $region32: #{resnet_basic_block1_forward.1} parent=0 // pred_region
    _
  $region33: #{resnet_basic_block1_forward.1} parent=0 // pred_fallthru
    _

</llo_original>
